<compile_context>
chip_gen: v7x
topology: tpu7x:2x2x1
jax: 0.10.0
libtpu: 0.0.40
codegen_flags: <defaults>
</compile_context>

<pallas_src>
import functools

import jax
import jax.numpy as jnp
from jax.experimental import pallas as pl
from jax.experimental.pallas import tpu as pltpu


def _rup(x, m):
    return ((x + m - 1) // m) * m


# ----------------------------------------------------------------------------
# Pallas kernel: one full-K matmul tile with fused bias + ReLU
# ----------------------------------------------------------------------------
def _mm_bias_relu_kernel(x_ref, w_ref, b_ref, o_ref):
    acc = jnp.dot(x_ref[...], w_ref[...], preferred_element_type=jnp.float32)
    y = acc + b_ref[...]
    o_ref[...] = jnp.maximum(y, 0.0).astype(o_ref.dtype)


def matmul_bias_relu(x, w, b):
    """y = relu(x @ w + b), bf16 MXU operands, f32 accumulate/epilogue."""
    M, K = x.shape
    K2, N = w.shape
    assert K == K2

    # M only needs sublane (8) alignment; lanes (128) apply to K / N.
    TM = min(_rup(max(M, 1), 8), 128)
    TN = 128
    Mp = _rup(M, TM)
    Kp = _rup(K, 128)
    Np = _rup(N, TN)

    # Full-K blocks: fine while K stays in the few-thousand range (here
    # K = k * C_in, a few hundred); double-buffered bf16 tiles are << VMEM
    # limits on v5e/v6e/v7x.
    xp = jnp.pad(x, ((0, Mp - M), (0, Kp - K))).astype(jnp.bfloat16)
    wp = jnp.pad(w, ((0, Kp - K), (0, Np - N))).astype(jnp.bfloat16)
    bp = jnp.pad(b, ((0, Np - N),)).reshape(1, Np).astype(jnp.float32)

    out = pl.pallas_call(
        _mm_bias_relu_kernel,
        out_shape=jax.ShapeDtypeStruct((Mp, Np), jnp.float32),
        grid=(Mp // TM, Np // TN),
        in_specs=[
            pl.BlockSpec((TM, Kp), lambda i, j: (i, 0)),
            pl.BlockSpec((Kp, TN), lambda i, j: (0, j)),
            pl.BlockSpec((1, TN), lambda i, j: (0, j)),
        ],
        out_specs=pl.BlockSpec((TM, TN), lambda i, j: (i, j)),
        compiler_params=pltpu.CompilerParams(
            dimension_semantics=("parallel", "parallel")),
    )(xp, wp, bp)
    return out[:M, :N]


# ----------------------------------------------------------------------------
# SameBlock1d forward: relu(conv1d(x, w, b, stride=1, padding=padding))
# ----------------------------------------------------------------------------
def same_block_1d(x, w, b, *, padding):
    """x: (N, C_in, T) NCT; w: (C_out, C_in, k); b: (C_out,). Returns NCT."""
    n, ci, t = x.shape
    co, ci2, k = w.shape
    assert ci == ci2
    to = t + 2 * padding - k + 1

    # NTC layout -> channels lane-contiguous, taps gathered by cheap slices.
    x_ntc = jnp.transpose(x, (0, 2, 1))
    x_pad = jnp.pad(x_ntc, ((0, 0), (padding, padding), (0, 0)))
    cols = [x_pad[:, i:i + to, :] for i in range(k)]
    col = jnp.stack(cols, axis=2).reshape(n * to, k * ci)   # tap-major, ch-minor

    wm = jnp.transpose(w, (2, 1, 0)).reshape(k * ci, co)     # matches col layout

    y = matmul_bias_relu(col, wm, b)                         # (n*to, co)
    return jnp.transpose(y.reshape(n, to, co), (0, 2, 1))    # back to NCT


# Plain-JAX reference (mirrors torch Conv1d + ReLU) for a correctness check.
def same_block_1d_ref(x, w, b, *, padding):
    y = jax.lax.conv_general_dilated(
        x, w, window_strides=(1,), padding=[(padding, padding)],
        dimension_numbers=("NCH", "OIH", "NCH"))
    return jnp.maximum(y + b[None, :, None], 0.0)


# ----------------------------------------------------------------------------
if __name__ == "__main__":
    key = jax.random.PRNGKey(0)
    kx, kw, kb = jax.random.split(key, 3)

    # Small shapes consistent with SameBlock1d usage (e.g. audio front-end):
    # batch=2, in_features=32, out_features=64, kernel_size=7, padding=3, T=16.
    N, C_IN, T = 2, 32, 16
    C_OUT, KSZ, PAD = 64, 7, 3

    x = jax.random.normal(kx, (N, C_IN, T), jnp.float32)
    w = jax.random.normal(kw, (C_OUT, C_IN, KSZ), jnp.float32) * (2.0 / (C_IN * KSZ)) ** 0.5
    b = 0.1 * jax.random.normal(kb, (C_OUT,), jnp.float32)

    fwd = jax.jit(functools.partial(same_block_1d, padding=PAD))
    out = fwd(x, w, b)
    jax.block_until_ready(out)

    ref = same_block_1d_ref(x, w, b, padding=PAD)
    assert out.shape == (N, C_OUT, T), out.shape
    assert bool(jnp.all(jnp.isfinite(out)))
    max_err = float(jnp.max(jnp.abs(out - ref)))
    assert max_err < 5e-2, f"max abs err vs reference: {max_err}"

    print("KERNEL_OK")
</pallas_src>

<mosaic_0001>
module attributes {stable_mosaic.version = 11 : i64} {
  func.func @_mm_bias_relu_kernel(%arg0: i32, %arg1: i32, %arg2: memref<32x256xbf16, #tpu.memory_space<vmem>>, %arg3: memref<256x128xbf16, #tpu.memory_space<vmem>>, %arg4: memref<1x128xf32, #tpu.memory_space<vmem>>, %arg5: memref<32x128xf32, #tpu.memory_space<vmem>>) attributes {dimension_semantics = [#tpu.dimension_semantics<parallel>, #tpu.dimension_semantics<parallel>], iteration_bounds = array<i64: 1, 1>, scalar_prefetch = 0 : i64, scratch_operands = 0 : i64, tpu.core_type = #tpu.core_type<tc>, window_params = [{transform_indices = @transform_0, window_bounds = array<i64: 32, 256>}, {transform_indices = @transform_1, window_bounds = array<i64: 256, 128>}, {transform_indices = @transform_2, window_bounds = array<i64: 1, 128>}, {transform_indices = @transform_3, window_bounds = array<i64: 32, 128>}]} {
    %c0 = arith.constant 0 : index
    %c0_0 = arith.constant 0 : index
    %0 = vector.load %arg2[%c0, %c0_0] : memref<32x256xbf16, #tpu.memory_space<vmem>>, vector<32x256xbf16>
    %c0_1 = arith.constant 0 : index
    %c0_2 = arith.constant 0 : index
    %1 = vector.load %arg3[%c0_1, %c0_2] : memref<256x128xbf16, #tpu.memory_space<vmem>>, vector<256x128xbf16>
    %cst = arith.constant dense<0.000000e+00> : vector<32x128xf32>
    %2 = tpu.matmul %0, %1, %cst {dimension_numbers = #tpu.dot_dimension_numbers<[1], [0], [0], [1], [0, 0, 1, 1], [], []>} : vector<32x256xbf16>, vector<256x128xbf16>, vector<32x128xf32> -> vector<32x128xf32>
    %c0_3 = arith.constant 0 : index
    %c0_4 = arith.constant 0 : index
    %3 = vector.load %arg4[%c0_3, %c0_4] : memref<1x128xf32, #tpu.memory_space<vmem>>, vector<1x128xf32>
    %4 = vector.broadcast %3 : vector<1x128xf32> to vector<32x128xf32>
    %5 = arith.addf %2, %4 : vector<32x128xf32>
    %cst_5 = arith.constant 0.000000e+00 : f32
    %6 = vector.broadcast %cst_5 : f32 to vector<32x128xf32>
    %7 = arith.maximumf %5, %6 : vector<32x128xf32>
    %c0_6 = arith.constant 0 : index
    %c0_7 = arith.constant 0 : index
    %8 = vector.load %arg5[%c0_6, %c0_7] : memref<32x128xf32, #tpu.memory_space<vmem>>, vector<32x128xf32>
    tpu.vector_store %arg5[%c0_6, %c0_7], %7 {strides = array<i32>} : memref<32x128xf32, #tpu.memory_space<vmem>>, vector<32x128xf32>,
    return
  }
  func.func @transform_0(%arg0: i32, %arg1: i32) -> (i32, i32) {
    %c0_i32 = arith.constant 0 : i32
    %c0_i32_0 = arith.constant 0 : i32
    return %arg0, %c0_i32 : i32, i32
  }
  func.func @transform_1(%arg0: i32, %arg1: i32) -> (i32, i32) {
    %c0_i32 = arith.constant 0 : i32
    %c0_i32_0 = arith.constant 0 : i32
    return %c0_i32, %arg1 : i32, i32
  }
  func.func @transform_2(%arg0: i32, %arg1: i32) -> (i32, i32) {
    %c0_i32 = arith.constant 0 : i32
    %c0_i32_0 = arith.constant 0 : i32
    return %c0_i32, %arg1 : i32, i32
  }
  func.func @transform_3(%arg0: i32, %arg1: i32) -> (i32, i32) {
    %c0_i32 = arith.constant 0 : i32
    return %arg0, %arg1 : i32, i32
  }
}

</mosaic_0001>

<llo_original>
// kernel: same_block_1d.1
$region0: #{same_block_1d.1}
  #allocation0 [shape = 'u32[]', space=smem, size = 0x4, offset = 0x4, fixed_abs, tag = 'smem constant byte address 0x4 - core index']
  #allocation1 [shape = 'u32[144,128]{1,0:T(1,128)}', space=vmem, size = 0x12000, scoped, tag = 'internal scratch']
  %s0 = inlined_call_operand.vmem [shape: bf16[32,256], index: 0, kind: input, shape index: {}]
  %s1 = inlined_call_operand.vmem [shape: bf16[256,128], index: 1, kind: input, shape index: {}]
  %s2 = inlined_call_operand.vmem [shape: f32[1,128], index: 2, kind: input, shape index: {}]
  %s3 = inlined_call_operand.hbm [shape: f32[32,128], index: 3, kind: output, shape index: {}]
  %s4 = sld [smem:[#allocation0]]
  $region22: #{same_block_1d.1} parent=0
    _
  %s6 = ssub.s32 1, %s4
  %s7 = scalar_select 0, %s6, %s4
  $region1: #{same_block_1d.1} parent=0
    #allocation2 [shape = 'u8[16384]{0}', space=vmem, size = 0x4000, scoped, tag = 'output window, operand 0, single buffered']
    #allocation3 [shape = 's32[1]{0}', space=sflag, size = 0x4, scoped, tag = 'scoped memory for same_block_1d.1']
    %8 = vsyncpa [#allocation3], 0
    // Predicated region
    $region2: #{same_block_1d.1} parent=1 // pred_check
      _
    $region3: #{same_block_1d.1} parent=1 // pred_check_branch
      %10 = sbr.rel (0) target = $region5
    $region4: #{same_block_1d.1} parent=1 // pred_region
      _
    $region5: #{same_block_1d.1} parent=1 // pred_fallthru
      _
    // Predicated region
    $region6: #{same_block_1d.1} parent=1 // pred_check
      _
    $region7: #{same_block_1d.1} parent=1 // pred_check_branch
      %12 = sbr.rel (0) target = $region9
    $region8: #{same_block_1d.1} parent=1 // pred_region
      _
    $region9: #{same_block_1d.1} parent=1 // pred_fallthru
      _
    // Predicated region
    $region10: #{same_block_1d.1} parent=1 // pred_check
      _
    $region11: #{same_block_1d.1} parent=1 // pred_check_branch
      %14 = sbr.rel (0) target = $region13
    $region12: #{same_block_1d.1} parent=1 // pred_region
      _
    $region13: #{same_block_1d.1} parent=1 // pred_fallthru
      _
    %v16 = vld [vmem:[%s0] sm:$0xff]
    %v17 = vld [vmem:[%s0 + $0x8] sm:$0xff]
    %v18 = vld [vmem:[%s0 + $0x10] sm:$0xff]
    %v19 = vld [vmem:[%s0 + $0x18] sm:$0xff]
    %v20 = vld [vmem:[%s1] sm:$0xf]
    %v21 = vld [vmem:[%s1 + $0x4] sm:$0xf]
    %v22 = vld [vmem:[%s1 + $0x8] sm:$0xf]
    %v23 = vld [vmem:[%s1 + $0xc] sm:$0xf]
    %v24 = vld [vmem:[%s1 + $0x10] sm:$0xf]
    %v25 = vld [vmem:[%s1 + $0x14] sm:$0xf]
    %v26 = vld [vmem:[%s1 + $0x18] sm:$0xf]
    %v27 = vld [vmem:[%s1 + $0x1c] sm:$0xf]
    %v28 = vld [vmem:[%s1 + $0x20] sm:$0xf]
    %v29 = vld [vmem:[%s1 + $0x24] sm:$0xf]
    %v30 = vld [vmem:[%s1 + $0x28] sm:$0xf]
    %v31 = vld [vmem:[%s1 + $0x2c] sm:$0xf]
    %v32 = vld [vmem:[%s1 + $0x30] sm:$0xf]
    %v33 = vld [vmem:[%s1 + $0x34] sm:$0xf]
    %v34 = vld [vmem:[%s1 + $0x38] sm:$0xf]
    %v35 = vld [vmem:[%s1 + $0x3c] sm:$0xf]
    %v36 = vld [vmem:[%s1 + $0x40] sm:$0xf]
    %v37 = vld [vmem:[%s1 + $0x44] sm:$0xf]
    %v38 = vld [vmem:[%s1 + $0x48] sm:$0xf]
    %v39 = vld [vmem:[%s1 + $0x4c] sm:$0xf]
    %v40 = vld [vmem:[%s1 + $0x50] sm:$0xf]
    %v41 = vld [vmem:[%s1 + $0x54] sm:$0xf]
    %v42 = vld [vmem:[%s1 + $0x58] sm:$0xf]
    %v43 = vld [vmem:[%s1 + $0x5c] sm:$0xf]
    %v44 = vld [vmem:[%s1 + $0x60] sm:$0xf]
    %v45 = vld [vmem:[%s1 + $0x64] sm:$0xf]
    %v46 = vld [vmem:[%s1 + $0x68] sm:$0xf]
    %v47 = vld [vmem:[%s1 + $0x6c] sm:$0xf]
    %v48 = vld [vmem:[%s1 + $0x70] sm:$0xf]
    %v49 = vld [vmem:[%s1 + $0x74] sm:$0xf]
    %v50 = vld [vmem:[%s1 + $0x78] sm:$0xf]
    %v51 = vld [vmem:[%s1 + $0x7c] sm:$0xf]
    %v52 = vld [vmem:[%s2] sm:$0x1]
    %v54 = vlaneseq
    %v55 = vshrl.u32 %v54, 7
    %v56 = vsub.s32 0, %v55
    %v57 = vrot.slane %v52, %v56
    %v63 = vunpack.c.l.b16 %v16
    %v64 = vunpack.c.h.b16 %v16
    %v65 = vunpack.c.l.b16 %v17
    %v66 = vunpack.c.h.b16 %v17
    %v67 = vunpack.c.l.b16 %v18
    %v68 = vunpack.c.h.b16 %v18
    %v69 = vunpack.c.l.b16 %v19
    %v70 = vunpack.c.h.b16 %v19
    %v71 = vpack.c.b16 %v65, %v63
    %v72 = vpack.c.b16 %v66, %v64
    %v73 = vpack.c.b16 %v69, %v67
    %v74 = vpack.c.b16 %v70, %v68
    %v111 = vunpack.c.l.b16 %v20
    %v112 = vunpack.c.l.b16 %v21
    %v113 = vunpack.c.l.b16 %v22
    %v114 = vunpack.c.l.b16 %v23
    %v115 = vunpack.c.l.b16 %v24
    %v116 = vunpack.c.l.b16 %v25
    %v117 = vunpack.c.l.b16 %v26
    %v118 = vunpack.c.l.b16 %v27
    %v119 = vunpack.c.l.b16 %v28
    %v120 = vunpack.c.l.b16 %v29
    %v121 = vunpack.c.l.b16 %v30
    %v122 = vunpack.c.l.b16 %v31
    %v123 = vunpack.c.l.b16 %v32
    %v124 = vunpack.c.l.b16 %v33
    %v125 = vunpack.c.l.b16 %v34
    %v126 = vunpack.c.l.b16 %v35
    %v127 = vunpack.c.l.b16 %v36
    %v128 = vunpack.c.l.b16 %v37
    %v129 = vunpack.c.l.b16 %v38
    %v130 = vunpack.c.l.b16 %v39
    %v131 = vunpack.c.l.b16 %v40
    %v132 = vunpack.c.l.b16 %v41
    %v133 = vunpack.c.l.b16 %v42
    %v134 = vunpack.c.l.b16 %v43
    %v135 = vunpack.c.l.b16 %v44
    %v136 = vunpack.c.l.b16 %v45
    %v137 = vunpack.c.l.b16 %v46
    %v138 = vunpack.c.l.b16 %v47
    %v139 = vunpack.c.l.b16 %v48
    %v140 = vunpack.c.l.b16 %v49
    %v141 = vunpack.c.l.b16 %v50
    %v142 = vunpack.c.l.b16 %v51
    %v143 = vpack.c.b16 %v112, %v111
    %v144 = vpack.c.b16 %v114, %v113
    %v145 = vpack.c.b16 %v116, %v115
    %v146 = vpack.c.b16 %v118, %v117
    %v147 = vpack.c.b16 %v120, %v119
    %v148 = vpack.c.b16 %v122, %v121
    %v149 = vpack.c.b16 %v124, %v123
    %v150 = vpack.c.b16 %v126, %v125
    %v151 = vpack.c.b16 %v128, %v127
    %v152 = vpack.c.b16 %v130, %v129
    %v153 = vpack.c.b16 %v132, %v131
    %v154 = vpack.c.b16 %v134, %v133
    %v155 = vpack.c.b16 %v136, %v135
    %v156 = vpack.c.b16 %v138, %v137
    %v157 = vpack.c.b16 %v140, %v139
    %v158 = vpack.c.b16 %v142, %v141
    %175 = vmatprep.subr.bf16.mxu0 0
    %176 = vmatpush1.bf16.msra.mxu0 %v143
    %177 = vmatprep.subr.bf16.mxu0 0
    %178 = vmatpush1.bf16.msra.mxu0 %v144
    %179 = vmatprep.subr.bf16.mxu0 0
    %180 = vmatpush1.bf16.msra.mxu0 %v145
    %181 = vmatprep.subr.bf16.mxu0 0
    %182 = vmatpush1.bf16.msra.mxu0 %v146
    %183 = vmatprep.subr.bf16.mxu0 0
    %184 = vmatpush1.bf16.msra.mxu0 %v147
    %185 = vmatprep.subr.bf16.mxu0 0
    %186 = vmatpush1.bf16.msra.mxu0 %v148
    %187 = vmatprep.subr.bf16.mxu0 0
    %188 = vmatpush1.bf16.msra.mxu0 %v149
    %189 = vmatprep.subr.bf16.mxu0 0
    %190 = vmatpush1.bf16.msra.mxu0 %v150
    %191 = vmatprep.subr.bf16.mxu0 0
    %192 = vmatpush1.bf16.msra.mxu0 %v151
    %193 = vmatprep.subr.bf16.mxu0 0
    %194 = vmatpush1.bf16.msra.mxu0 %v152
    %195 = vmatprep.subr.bf16.mxu0 0
    %196 = vmatpush1.bf16.msra.mxu0 %v153
    %197 = vmatprep.subr.bf16.mxu0 0
    %198 = vmatpush1.bf16.msra.mxu0 %v154
    %199 = vmatprep.subr.bf16.mxu0 0
    %200 = vmatpush1.bf16.msra.mxu0 %v155
    %201 = vmatprep.subr.bf16.mxu0 0
    %202 = vmatpush1.bf16.msra.mxu0 %v156
    %203 = vmatprep.subr.bf16.mxu0 0
    %204 = vmatpush1.bf16.msra.mxu0 %v157
    %205 = vmatprep.subr.bf16.mxu0 0
    %206 = vmatpush1.bf16.msra.mxu0 %v158
    %207 = vmatprep.mubr.bf16.mxu0 %v72
    %208 = vmatmul.mubr.bf16.gmra.mrb[0].mxu0 %v71
    %v209 = vpop.f32.mrb[0].mxu0
    %v210 = vadd.f32 %v57, %v209
    %v211 = vpop.f32.mrb[0].mxu0
    %v212 = vpop.f32.mrb[0].mxu0
    %v213 = vadd.f32 %v57, %v212
    %v214 = vpop.f32.mrb[0].mxu0
    %215 = vmatprep.mubr.bf16.mxu0 %v74
    %216 = vmatmul.mubr.bf16.gmra.mrb[0].mxu0 %v73
    %v217 = vpop.f32.mrb[0].mxu0
    %v218 = vadd.f32 %v57, %v217
    %v219 = vpop.f32.mrb[0].mxu0
    %v220 = vpop.f32.mrb[0].mxu0
    %v221 = vadd.f32 %v57, %v220
    %v222 = vpop.f32.mrb[0].mxu0
    %223 = vdwg.mxu0
    %v224 = vmax.f32 %v210, 0.0
    %v225 = vmax.f32 %v213, 0.0
    %v226 = vmax.f32 %v218, 0.0
    %v227 = vmax.f32 %v221, 0.0
    %228 = vst [vmem:[#allocation2] sm:$0xff] %v224
    %229 = vst [vmem:[#allocation2 + $0x8] sm:$0xff] %v225
    %230 = vst [vmem:[#allocation2 + $0x10] sm:$0xff] %v226
    %231 = vst [vmem:[#allocation2 + $0x18] sm:$0xff] %v227
    // Predicated region
    $region14: #{same_block_1d.1} parent=1 // pred_check
      _
    $region15: #{same_block_1d.1} parent=1 // pred_check_branch
      %233 = sbr.rel (0) target = $region17
    $region16: #{same_block_1d.1} parent=1 // pred_region
      %s235 = ssub.s32 512, 512
      %236 = vsyncadd [#allocation3], %s235
      %s237 = sshll.u32 [#allocation2], 4
      %s238 = int_to_ptr.vmem [resolvable:$true] %s237
      %243 = dma.vmem_to_hbm [thread:$0]  %s238, 512, %s3, [#allocation3], 128, 128, 8
    $region17: #{same_block_1d.1} parent=1 // pred_fallthru
      _
    // Predicated region
    $region18: #{same_block_1d.1} parent=1 // pred_check
      _
    $region19: #{same_block_1d.1} parent=1 // pred_check_branch
      %245 = sbr.rel (0) target = $region21
    $region20: #{same_block_1d.1} parent=1 // pred_region
      %246 = dma.done [#allocation3], 512
    $region21: #{same_block_1d.1} parent=1 // pred_fallthru
      _
    %247 = vsyncpa [#allocation3], 1

</llo_original>
